<compile_context>
chip_gen: v5e
topology: v5e:2x2
jax: 0.10.0
libtpu: 0.0.40
codegen_flags: <defaults>
</compile_context>

<pallas_src>
import jax
import jax.numpy as jnp
from jax import lax
from jax.experimental import pallas as pl
from jax.experimental.pallas import tpu as pltpu

F32 = jnp.float32
BN_EPS = 1e-5


def _match_kernel(aim_ref, det_ref,
                  wproj_ref, bproj_ref,      # fused g/theta/phi projection
                  wWQ_ref,                   # BN-folded W and Q conv weights, stacked (2C, I)
                  w1_ref, b1_ref, w2_ref,    # ChannelGate MLP (channel-major)
                  cbias_ref,                 # packed per-channel biases [bW ; bQ ; b2] (3C, 1)
                  act_aim_ref, non_det_ref):
    aim = aim_ref[0]                          # (C, Na)  channel-major, lanes = spatial
    det = det_ref[0]                          # (C, Nd)
    C, Na = aim.shape
    Nd = det.shape[1]
    inter = wWQ_ref.shape[1]

    # Fused 1x1-conv projections (channel matmuls, output lanes = spatial).
    wproj = wproj_ref[...]                    # (3I, C)
    bproj = bproj_ref[...]                    # (3I, 1)
    pa = jnp.dot(wproj, aim, preferred_element_type=F32) + bproj   # (3I, Na)
    pd = jnp.dot(wproj, det, preferred_element_type=F32) + bproj   # (3I, Nd)

    a_x     = pa[0 * inter:1 * inter]         # g(aim)      (I, Na)
    theta_x = pa[1 * inter:2 * inter]         # theta(aim)  (I, Na)
    d_x     = pd[0 * inter:1 * inter]         # g(det)      (I, Nd)
    phi_x   = pd[2 * inter:3 * inter]         # phi(det)    (I, Nd)

    # Reassociated non-local attention; the (Na, Nd) affinity is never built.
    # dot_general contracts the spatial (lane) axes -> small (I, I) Grams.
    dn = (((1,), (1,)), ((), ()))
    Ma = lax.dot_general(d_x, phi_x, dn, preferred_element_type=F32)    # (I, I)
    Md = lax.dot_general(a_x, theta_x, dn, preferred_element_type=F32)  # (I, I)

    non_aim = jnp.dot(Ma, theta_x, preferred_element_type=F32) * (1.0 / Nd)  # (I, Na)
    non_det = jnp.dot(Md, phi_x,   preferred_element_type=F32) * (1.0 / Na)  # (I, Nd)

    # W / Q branches: 1x1 conv with eval-mode BatchNorm pre-folded + residual.
    wWQ = wWQ_ref[...]                        # (2C, I)
    cb = cbias_ref[...]                       # (3C, 1)
    bW = cb[0 * C:1 * C]                      # (C, 1)   (C multiple of 8 -> aligned slices)
    bQ = cb[1 * C:2 * C]
    b2 = cb[2 * C:3 * C]

    y = jnp.dot(wWQ[:C], non_aim, preferred_element_type=F32) + bW + aim   # (C, Na)
    z = jnp.dot(wWQ[C:], non_det, preferred_element_type=F32) + bQ + det   # (C, Nd)

    # ChannelGate on y: global avg & max over spatial (lane reductions) + MLP.
    avg_p = jnp.mean(y, axis=1, keepdims=True)     # (C, 1)
    max_p = jnp.max(y, axis=1, keepdims=True)      # (C, 1)

    w1 = w1_ref[...]                               # (Cr, C)
    b1 = b1_ref[...]                               # (Cr, 1)
    h_avg = jnp.maximum(jnp.dot(w1, avg_p, preferred_element_type=F32) + b1, 0.0)
    h_max = jnp.maximum(jnp.dot(w1, max_p, preferred_element_type=F32) + b1, 0.0)
    # mlp(avg) + mlp(max) = w2 @ (h_avg + h_max) + 2*b2
    att = jnp.dot(w2_ref[...], h_avg + h_max, preferred_element_type=F32) + 2.0 * b2
    scale = jax.nn.sigmoid(att)                    # (C, 1)

    act_aim_ref[0] = y * scale
    non_det_ref[0] = z


def match_block_pallas(aim_nchw, det_nchw, params):
    B, C, Ha, Wa = aim_nchw.shape
    _, _, Hd, Wd = det_nchw.shape
    Na, Nd = Ha * Wa, Hd * Wd

    # Free reshape: NCHW -> (B, C, N) channel-major (no transposes).
    aim_f = aim_nchw.reshape(B, C, Na)
    det_f = det_nchw.reshape(B, C, Nd)

    p = params
    inter = p["wg"].shape[1]

    # Fused projection weight/bias: rows = [g ; theta ; phi], channel-major.
    w_proj = jnp.concatenate([p["wg"].T, p["wtheta"].T, p["wphi"].T], axis=0)   # (3I, C)
    b_proj = jnp.concatenate([p["bg"], p["btheta"], p["bphi"]], axis=1).T       # (3I, 1)

    # Fold eval-mode BatchNorm into the W / Q 1x1-conv weights.
    sW = p["bnW_g"] * lax.rsqrt(p["bnW_v"] + BN_EPS)                            # (1, C)
    sQ = p["bnQ_g"] * lax.rsqrt(p["bnQ_v"] + BN_EPS)
    wW_f = (p["wW"] * sW).T                                                     # (C, I)
    wQ_f = (p["wQ"] * sQ).T
    bW_f = ((p["bW"] - p["bnW_m"]) * sW + p["bnW_b"]).T                         # (C, 1)
    bQ_f = ((p["bQ"] - p["bnQ_m"]) * sQ + p["bnQ_b"]).T
    wWQ = jnp.concatenate([wW_f, wQ_f], axis=0)                                 # (2C, I)

    # ChannelGate MLP in channel-major form, packed per-channel biases.
    w1T = p["w1"].T                                                             # (Cr, C)
    b1c = p["b1"].T                                                             # (Cr, 1)
    w2T = p["w2"].T                                                             # (C, Cr)
    cbias = jnp.concatenate([bW_f, bQ_f, p["b2"].T], axis=0)                    # (3C, 1)

    weight_args = (w_proj, b_proj, wWQ, w1T, b1c, w2T, cbias)

    def full_spec(arr):
        return pl.BlockSpec(arr.shape, lambda b: (0,) * arr.ndim)

    in_specs = [
        pl.BlockSpec((1, C, Na), lambda b: (b, 0, 0)),
        pl.BlockSpec((1, C, Nd), lambda b: (b, 0, 0)),
    ] + [full_spec(w) for w in weight_args]

    out_specs = (
        pl.BlockSpec((1, C, Na), lambda b: (b, 0, 0)),
        pl.BlockSpec((1, C, Nd), lambda b: (b, 0, 0)),
    )

    act_aim_f, non_det_f = pl.pallas_call(
        _match_kernel,
        out_shape=(
            jax.ShapeDtypeStruct((B, C, Na), F32),
            jax.ShapeDtypeStruct((B, C, Nd), F32),
        ),
        grid=(B,),
        in_specs=in_specs,
        out_specs=out_specs,
        compiler_params=pltpu.CompilerParams(
            dimension_semantics=("parallel",)),
    )(aim_f, det_f, *weight_args)

    # (B, C, N) -> NCHW is a free reshape.
    return act_aim_f.reshape(B, C, Ha, Wa), non_det_f.reshape(B, C, Hd, Wd)


def make_params(key, C, reduction_ratio=16):
    inter = max(C // 2, 1)
    Cr = max(C // reduction_ratio, 1)
    ks = jax.random.split(key, 22)

    def w(k, shape, scale=0.1):
        return (scale * jax.random.normal(k, shape)).astype(F32)

    params = dict(
        # g / theta / phi : 1x1 conv C -> inter   (stored token-major (in, out))
        wg=w(ks[0], (C, inter)), bg=w(ks[1], (1, inter)),
        wtheta=w(ks[2], (C, inter)), btheta=w(ks[3], (1, inter)),
        wphi=w(ks[4], (C, inter)), bphi=w(ks[5], (1, inter)),
        # W branch: conv inter -> C, eval-mode BatchNorm.
        wW=w(ks[6], (inter, C)), bW=w(ks[7], (1, C)),
        bnW_g=(1.0 + w(ks[8], (1, C))).astype(F32), bnW_b=w(ks[9], (1, C)),
        bnW_m=w(ks[10], (1, C)),
        bnW_v=(0.5 + jax.random.uniform(ks[11], (1, C))).astype(F32),
        # Q branch
        wQ=w(ks[12], (inter, C)), bQ=w(ks[13], (1, C)),
        bnQ_g=(1.0 + w(ks[14], (1, C))).astype(F32), bnQ_b=w(ks[15], (1, C)),
        bnQ_m=w(ks[16], (1, C)),
        bnQ_v=(0.5 + jax.random.uniform(ks[17], (1, C))).astype(F32),
        # ChannelGate MLP: Linear(C, C//16) -> ReLU -> Linear(C//16, C)
        w1=w(ks[18], (C, Cr)), b1=w(ks[19], (1, Cr)),
        w2=w(ks[20], (Cr, C)), b2=w(ks[21], (1, C)),
    )
    return params


def match_block_reference(aim, det, p):
    """Plain-JAX reference mirroring the PyTorch forward (eval-mode BN)."""
    B, C, Ha, Wa = aim.shape
    _, _, Hd, Wd = det.shape
    Na, Nd = Ha * Wa, Hd * Wd
    aim_f = aim.reshape(B, C, Na).transpose(0, 2, 1)
    det_f = det.reshape(B, C, Nd).transpose(0, 2, 1)

    def lin(x, w, b):
        return x @ w + b

    d_x = lin(det_f, p["wg"], p["bg"])
    a_x = lin(aim_f, p["wg"], p["bg"])
    th = lin(aim_f, p["wtheta"], p["btheta"])
    ph = lin(det_f, p["wphi"], p["bphi"])
    f = jnp.einsum("bnc,bmc->bnm", th, ph)
    non_aim = jnp.einsum("bnm,bmc->bnc", f, d_x) / Nd
    non_det = jnp.einsum("bnm,bnc->bmc", f, a_x) / Na

    def bn(x, g, b, m, v):
        return g * (x - m) * lax.rsqrt(v + BN_EPS) + b

    y = bn(lin(non_aim, p["wW"], p["bW"]), p["bnW_g"], p["bnW_b"], p["bnW_m"], p["bnW_v"]) + aim_f
    z = bn(lin(non_det, p["wQ"], p["bQ"]), p["bnQ_g"], p["bnQ_b"], p["bnQ_m"], p["bnQ_v"]) + det_f

    def mlp(v):
        return jnp.maximum(v @ p["w1"] + p["b1"], 0.0) @ p["w2"] + p["b2"]

    att = mlp(jnp.mean(y, axis=1)) + mlp(jnp.max(y, axis=1))
    scale = jax.nn.sigmoid(att)[:, None, :]
    act_aim = (y * scale).transpose(0, 2, 1).reshape(B, C, Ha, Wa)
    non_det_o = z.transpose(0, 2, 1).reshape(B, C, Hd, Wd)
    return act_aim, non_det_o


if __name__ == "__main__":
    key = jax.random.PRNGKey(0)
    k_aim, k_det, k_par = jax.random.split(key, 3)

    B, C = 2, 32            # C >= 16 so ChannelGate hidden dim C//16 > 0
    Ha, Wa = 8, 16          # aim spatial    -> Na = 128 (lane-dense)
    Hd, Wd = 16, 16         # detect spatial -> Nd = 256 (lane-dense)

    aim = jax.random.normal(k_aim, (B, C, Ha, Wa), dtype=F32)
    det = jax.random.normal(k_det, (B, C, Hd, Wd), dtype=F32)
    params = make_params(k_par, C)

    act_aim, non_det = jax.jit(match_block_pallas)(aim, det, params)
    jax.block_until_ready((act_aim, non_det))

    ref_aim, ref_det = match_block_reference(aim, det, params)
    assert act_aim.shape == (B, C, Ha, Wa) and non_det.shape == (B, C, Hd, Wd)
    # Reassociated products change f32 accumulation order -> slightly looser tol.
    assert jnp.allclose(act_aim, ref_aim, atol=1e-3, rtol=1e-3)
    assert jnp.allclose(non_det, ref_det, atol=1e-3, rtol=1e-3)

    print("KERNEL_OK")
</pallas_src>

<mosaic_0001>
module attributes {stable_mosaic.version = 11 : i64} {
  func.func @_match_kernel(%arg0: i32, %arg1: memref<1x32x128xf32, #tpu.memory_space<vmem>>, %arg2: memref<1x32x256xf32, #tpu.memory_space<vmem>>, %arg3: memref<48x32xf32, #tpu.memory_space<vmem>>, %arg4: memref<48x1xf32, #tpu.memory_space<vmem>>, %arg5: memref<64x16xf32, #tpu.memory_space<vmem>>, %arg6: memref<2x32xf32, #tpu.memory_space<vmem>>, %arg7: memref<2x1xf32, #tpu.memory_space<vmem>>, %arg8: memref<32x2xf32, #tpu.memory_space<vmem>>, %arg9: memref<96x1xf32, #tpu.memory_space<vmem>>, %arg10: memref<1x32x128xf32, #tpu.memory_space<vmem>>, %arg11: memref<1x32x256xf32, #tpu.memory_space<vmem>>) attributes {dimension_semantics = [#tpu.dimension_semantics<parallel>], iteration_bounds = array<i64: 2>, scalar_prefetch = 0 : i64, scratch_operands = 0 : i64, tpu.core_type = #tpu.core_type<tc>, window_params = [{transform_indices = @transform_0, window_bounds = array<i64: 1, 32, 128>}, {transform_indices = @transform_1, window_bounds = array<i64: 1, 32, 256>}, {pipeline_mode = #tpu.pipeline_mode<synchronous>, transform_indices = @transform_2, window_bounds = array<i64: 48, 32>}, {pipeline_mode = #tpu.pipeline_mode<synchronous>, transform_indices = @transform_3, window_bounds = array<i64: 48, 1>}, {pipeline_mode = #tpu.pipeline_mode<synchronous>, transform_indices = @transform_4, window_bounds = array<i64: 64, 16>}, {pipeline_mode = #tpu.pipeline_mode<synchronous>, transform_indices = @transform_5, window_bounds = array<i64: 2, 32>}, {pipeline_mode = #tpu.pipeline_mode<synchronous>, transform_indices = @transform_6, window_bounds = array<i64: 2, 1>}, {pipeline_mode = #tpu.pipeline_mode<synchronous>, transform_indices = @transform_7, window_bounds = array<i64: 32, 2>}, {pipeline_mode = #tpu.pipeline_mode<synchronous>, transform_indices = @transform_8, window_bounds = array<i64: 96, 1>}, {transform_indices = @transform_9, window_bounds = array<i64: 1, 32, 128>}, {transform_indices = @transform_10, window_bounds = array<i64: 1, 32, 256>}]} {
    %c0 = arith.constant 0 : index
    %c0_0 = arith.constant 0 : index
    %c0_1 = arith.constant 0 : index
    %0 = vector.load %arg1[%c0, %c0_0, %c0_1] : memref<1x32x128xf32, #tpu.memory_space<vmem>>, vector<1x32x128xf32>
    %1 = vector.shape_cast %0 : vector<1x32x128xf32> to vector<32x128xf32>
    %c0_2 = arith.constant 0 : index
    %c0_3 = arith.constant 0 : index
    %c0_4 = arith.constant 0 : index
    %2 = vector.load %arg2[%c0_2, %c0_3, %c0_4] : memref<1x32x256xf32, #tpu.memory_space<vmem>>, vector<1x32x256xf32>
    %3 = vector.shape_cast %2 : vector<1x32x256xf32> to vector<32x256xf32>
    %c0_5 = arith.constant 0 : index
    %c0_6 = arith.constant 0 : index
    %4 = vector.load %arg3[%c0_5, %c0_6] : memref<48x32xf32, #tpu.memory_space<vmem>>, vector<48x32xf32>
    %c0_7 = arith.constant 0 : index
    %c0_8 = arith.constant 0 : index
    %5 = vector.load %arg4[%c0_7, %c0_8] : memref<48x1xf32, #tpu.memory_space<vmem>>, vector<48x1xf32>
    %cst = arith.constant dense<0.000000e+00> : vector<48x128xf32>
    %6 = tpu.matmul %4, %1, %cst {dimension_numbers = #tpu.dot_dimension_numbers<[1], [0], [0], [1], [0, 0, 1, 1], [], []>} : vector<48x32xf32>, vector<32x128xf32>, vector<48x128xf32> -> vector<48x128xf32>
    %7 = vector.broadcast %5 : vector<48x1xf32> to vector<48x128xf32>
    %8 = arith.addf %6, %7 : vector<48x128xf32>
    %cst_9 = arith.constant dense<0.000000e+00> : vector<48x256xf32>
    %9 = tpu.matmul %4, %3, %cst_9 {dimension_numbers = #tpu.dot_dimension_numbers<[1], [0], [0], [1], [0, 0, 1, 1], [], []>} : vector<48x32xf32>, vector<32x256xf32>, vector<48x256xf32> -> vector<48x256xf32>
    %10 = vector.broadcast %5 : vector<48x1xf32> to vector<48x256xf32>
    %11 = arith.addf %9, %10 : vector<48x256xf32>
    %12 = vector.extract_strided_slice %8 {offsets = [0, 0], sizes = [16, 128], strides = [1, 1]} : vector<48x128xf32> to vector<16x128xf32>
    %13 = vector.extract_strided_slice %8 {offsets = [16, 0], sizes = [16, 128], strides = [1, 1]} : vector<48x128xf32> to vector<16x128xf32>
    %14 = vector.extract_strided_slice %11 {offsets = [0, 0], sizes = [16, 256], strides = [1, 1]} : vector<48x256xf32> to vector<16x256xf32>
    %15 = vector.extract_strided_slice %11 {offsets = [32, 0], sizes = [16, 256], strides = [1, 1]} : vector<48x256xf32> to vector<16x256xf32>
    %cst_10 = arith.constant dense<0.000000e+00> : vector<16x16xf32>
    %16 = tpu.matmul %14, %15, %cst_10 {dimension_numbers = #tpu.dot_dimension_numbers<[1], [1], [0], [0], [0, 0, 1, 0], [], []>} : vector<16x256xf32>, vector<16x256xf32>, vector<16x16xf32> -> vector<16x16xf32>
    %cst_11 = arith.constant dense<0.000000e+00> : vector<16x16xf32>
    %17 = tpu.matmul %12, %13, %cst_11 {dimension_numbers = #tpu.dot_dimension_numbers<[1], [1], [0], [0], [0, 0, 1, 0], [], []>} : vector<16x128xf32>, vector<16x128xf32>, vector<16x16xf32> -> vector<16x16xf32>
    %cst_12 = arith.constant dense<0.000000e+00> : vector<16x128xf32>
    %18 = tpu.matmul %16, %13, %cst_12 {dimension_numbers = #tpu.dot_dimension_numbers<[1], [0], [0], [1], [0, 0, 1, 1], [], []>} : vector<16x16xf32>, vector<16x128xf32>, vector<16x128xf32> -> vector<16x128xf32>
    %cst_13 = arith.constant 3.906250e-03 : f32
    %19 = vector.broadcast %cst_13 : f32 to vector<16x128xf32>
    %20 = arith.mulf %18, %19 : vector<16x128xf32>
    %cst_14 = arith.constant dense<0.000000e+00> : vector<16x256xf32>
    %21 = tpu.matmul %17, %15, %cst_14 {dimension_numbers = #tpu.dot_dimension_numbers<[1], [0], [0], [1], [0, 0, 1, 1], [], []>} : vector<16x16xf32>, vector<16x256xf32>, vector<16x256xf32> -> vector<16x256xf32>
    %cst_15 = arith.constant 7.812500e-03 : f32
    %22 = vector.broadcast %cst_15 : f32 to vector<16x256xf32>
    %23 = arith.mulf %21, %22 : vector<16x256xf32>
    %c0_16 = arith.constant 0 : index
    %c0_17 = arith.constant 0 : index
    %24 = vector.load %arg5[%c0_16, %c0_17] : memref<64x16xf32, #tpu.memory_space<vmem>>, vector<64x16xf32>
    %c0_18 = arith.constant 0 : index
    %c0_19 = arith.constant 0 : index
    %25 = vector.load %arg9[%c0_18, %c0_19] : memref<96x1xf32, #tpu.memory_space<vmem>>, vector<96x1xf32>
    %26 = vector.extract_strided_slice %25 {offsets = [0, 0], sizes = [32, 1], strides = [1, 1]} : vector<96x1xf32> to vector<32x1xf32>
    %27 = vector.extract_strided_slice %25 {offsets = [32, 0], sizes = [32, 1], strides = [1, 1]} : vector<96x1xf32> to vector<32x1xf32>
    %28 = vector.extract_strided_slice %25 {offsets = [64, 0], sizes = [32, 1], strides = [1, 1]} : vector<96x1xf32> to vector<32x1xf32>
    %29 = vector.extract_strided_slice %24 {offsets = [0, 0], sizes = [32, 16], strides = [1, 1]} : vector<64x16xf32> to vector<32x16xf32>
    %cst_20 = arith.constant dense<0.000000e+00> : vector<32x128xf32>
    %30 = tpu.matmul %29, %20, %cst_20 {dimension_numbers = #tpu.dot_dimension_numbers<[1], [0], [0], [1], [0, 0, 1, 1], [], []>} : vector<32x16xf32>, vector<16x128xf32>, vector<32x128xf32> -> vector<32x128xf32>
    %31 = vector.broadcast %26 : vector<32x1xf32> to vector<32x128xf32>
    %32 = arith.addf %30, %31 : vector<32x128xf32>
    %33 = arith.addf %32, %1 : vector<32x128xf32>
    %34 = vector.extract_strided_slice %24 {offsets = [32, 0], sizes = [32, 16], strides = [1, 1]} : vector<64x16xf32> to vector<32x16xf32>
    %cst_21 = arith.constant dense<0.000000e+00> : vector<32x256xf32>
    %35 = tpu.matmul %34, %23, %cst_21 {dimension_numbers = #tpu.dot_dimension_numbers<[1], [0], [0], [1], [0, 0, 1, 1], [], []>} : vector<32x16xf32>, vector<16x256xf32>, vector<32x256xf32> -> vector<32x256xf32>
    %36 = vector.broadcast %27 : vector<32x1xf32> to vector<32x256xf32>
    %37 = arith.addf %35, %36 : vector<32x256xf32>
    %38 = arith.addf %37, %3 : vector<32x256xf32>
    %cst_22 = arith.constant dense<0.000000e+00> : vector<32xf32>
    %39 = vector.multi_reduction <add>, %33, %cst_22 [1] : vector<32x128xf32> to vector<32xf32>
    %40 = vector.shape_cast %39 : vector<32xf32> to vector<32x1xf32>
    %cst_23 = arith.constant 1.280000e+02 : f32
    %41 = vector.broadcast %cst_23 : f32 to vector<32x1xf32>
    %42 = arith.divf %40, %41 : vector<32x1xf32>
    %cst_24 = arith.constant dense<0xFF800000> : vector<32xf32>
    %43 = vector.multi_reduction <maximumf>, %33, %cst_24 [1] : vector<32x128xf32> to vector<32xf32>
    %44 = vector.shape_cast %43 : vector<32xf32> to vector<32x1xf32>
    %c0_25 = arith.constant 0 : index
    %c0_26 = arith.constant 0 : index
    %45 = vector.load %arg6[%c0_25, %c0_26] : memref<2x32xf32, #tpu.memory_space<vmem>>, vector<2x32xf32>
    %c0_27 = arith.constant 0 : index
    %c0_28 = arith.constant 0 : index
    %46 = vector.load %arg7[%c0_27, %c0_28] : memref<2x1xf32, #tpu.memory_space<vmem>>, vector<2x1xf32>
    %cst_29 = arith.constant dense<0.000000e+00> : vector<2x1xf32>
    %47 = tpu.matmul %45, %42, %cst_29 {dimension_numbers = #tpu.dot_dimension_numbers<[1], [0], [0], [1], [0, 0, 1, 1], [], []>} : vector<2x32xf32>, vector<32x1xf32>, vector<2x1xf32> -> vector<2x1xf32>
    %48 = arith.addf %47, %46 : vector<2x1xf32>
    %cst_30 = arith.constant 0.000000e+00 : f32
    %49 = vector.broadcast %cst_30 : f32 to vector<2x1xf32>
    %50 = arith.maximumf %48, %49 : vector<2x1xf32>
    %cst_31 = arith.constant dense<0.000000e+00> : vector<2x1xf32>
    %51 = tpu.matmul %45, %44, %cst_31 {dimension_numbers = #tpu.dot_dimension_numbers<[1], [0], [0], [1], [0, 0, 1, 1], [], []>} : vector<2x32xf32>, vector<32x1xf32>, vector<2x1xf32> -> vector<2x1xf32>
    %52 = arith.addf %51, %46 : vector<2x1xf32>
    %cst_32 = arith.constant 0.000000e+00 : f32
    %53 = vector.broadcast %cst_32 : f32 to vector<2x1xf32>
    %54 = arith.maximumf %52, %53 : vector<2x1xf32>
    %c0_33 = arith.constant 0 : index
    %c0_34 = arith.constant 0 : index
    %55 = vector.load %arg8[%c0_33, %c0_34] : memref<32x2xf32, #tpu.memory_space<vmem>>, vector<32x2xf32>
    %56 = arith.addf %50, %54 : vector<2x1xf32>
    %cst_35 = arith.constant dense<0.000000e+00> : vector<32x1xf32>
    %57 = tpu.matmul %55, %56, %cst_35 {dimension_numbers = #tpu.dot_dimension_numbers<[1], [0], [0], [1], [0, 0, 1, 1], [], []>} : vector<32x2xf32>, vector<2x1xf32>, vector<32x1xf32> -> vector<32x1xf32>
    %cst_36 = arith.constant 2.000000e+00 : f32
    %58 = vector.broadcast %cst_36 : f32 to vector<32x1xf32>
    %59 = arith.mulf %58, %28 : vector<32x1xf32>
    %60 = arith.addf %57, %59 : vector<32x1xf32>
    %61 = arith.negf %60 : vector<32x1xf32>
    %62 = math.exp %61 : vector<32x1xf32>
    %cst_37 = arith.constant 1.000000e+00 : f32
    %63 = vector.broadcast %cst_37 : f32 to vector<32x1xf32>
    %64 = arith.addf %63, %62 : vector<32x1xf32>
    %65 = arith.divf %63, %64 : vector<32x1xf32>
    %66 = vector.broadcast %65 : vector<32x1xf32> to vector<32x128xf32>
    %67 = arith.mulf %33, %66 : vector<32x128xf32>
    %c0_38 = arith.constant 0 : index
    %c0_39 = arith.constant 0 : index
    %c0_40 = arith.constant 0 : index
    %68 = vector.load %arg10[%c0_38, %c0_39, %c0_40] : memref<1x32x128xf32, #tpu.memory_space<vmem>>, vector<1x32x128xf32>
    %69 = vector.shape_cast %68 : vector<1x32x128xf32> to vector<32x128xf32>
    %70 = vector.shape_cast %67 : vector<32x128xf32> to vector<1x32x128xf32>
    tpu.vector_store %arg10[%c0_38, %c0_39, %c0_40], %70 {strides = array<i32>} : memref<1x32x128xf32, #tpu.memory_space<vmem>>, vector<1x32x128xf32>,
    %c0_41 = arith.constant 0 : index
    %c0_42 = arith.constant 0 : index
    %c0_43 = arith.constant 0 : index
    %71 = vector.load %arg11[%c0_41, %c0_42, %c0_43] : memref<1x32x256xf32, #tpu.memory_space<vmem>>, vector<1x32x256xf32>
    %72 = vector.shape_cast %71 : vector<1x32x256xf32> to vector<32x256xf32>
    %73 = vector.shape_cast %38 : vector<32x256xf32> to vector<1x32x256xf32>
    tpu.vector_store %arg11[%c0_41, %c0_42, %c0_43], %73 {strides = array<i32>} : memref<1x32x256xf32, #tpu.memory_space<vmem>>, vector<1x32x256xf32>,
    return
  }
  func.func @transform_0(%arg0: i32) -> (i32, i32, i32) {
    %c0_i32 = arith.constant 0 : i32
    %c0_i32_0 = arith.constant 0 : i32
    %c0_i32_1 = arith.constant 0 : i32
    return %arg0, %c0_i32, %c0_i32_0 : i32, i32, i32
  }
  func.func @transform_1(%arg0: i32) -> (i32, i32, i32) {
    %c0_i32 = arith.constant 0 : i32
    %c0_i32_0 = arith.constant 0 : i32
    %c0_i32_1 = arith.constant 0 : i32
    return %arg0, %c0_i32, %c0_i32_0 : i32, i32, i32
  }
  func.func @transform_2(%arg0: i32) -> (i32, i32) {
    %c0_i32 = arith.constant 0 : i32
    %c0_i32_0 = arith.constant 0 : i32
    %c0_i32_1 = arith.constant 0 : i32
    return %c0_i32, %c0_i32_0 : i32, i32
  }
  func.func @transform_3(%arg0: i32) -> (i32, i32) {
    %c0_i32 = arith.constant 0 : i32
    %c0_i32_0 = arith.constant 0 : i32
    %c0_i32_1 = arith.constant 0 : i32
    return %c0_i32, %c0_i32_0 : i32, i32
  }
  func.func @transform_4(%arg0: i32) -> (i32, i32) {
    %c0_i32 = arith.constant 0 : i32
    %c0_i32_0 = arith.constant 0 : i32
    %c0_i32_1 = arith.constant 0 : i32
    return %c0_i32, %c0_i32_0 : i32, i32
  }
  func.func @transform_5(%arg0: i32) -> (i32, i32) {
    %c0_i32 = arith.constant 0 : i32
    %c0_i32_0 = arith.constant 0 : i32
    %c0_i32_1 = arith.constant 0 : i32
    return %c0_i32, %c0_i32_0 : i32, i32
  }
  func.func @transform_6(%arg0: i32) -> (i32, i32) {
    %c0_i32 = arith.constant 0 : i32
    %c0_i32_0 = arith.constant 0 : i32
    %c0_i32_1 = arith.constant 0 : i32
    return %c0_i32, %c0_i32_0 : i32, i32
  }
  func.func @transform_7(%arg0: i32) -> (i32, i32) {
    %c0_i32 = arith.constant 0 : i32
    %c0_i32_0 = arith.constant 0 : i32
    %c0_i32_1 = arith.constant 0 : i32
    return %c0_i32, %c0_i32_0 : i32, i32
  }
  func.func @transform_8(%arg0: i32) -> (i32, i32) {
    %c0_i32 = arith.constant 0 : i32
    %c0_i32_0 = arith.constant 0 : i32
    %c0_i32_1 = arith.constant 0 : i32
    return %c0_i32, %c0_i32_0 : i32, i32
  }
  func.func @transform_9(%arg0: i32) -> (i32, i32, i32) {
    %c0_i32 = arith.constant 0 : i32
    %c0_i32_0 = arith.constant 0 : i32
    %c0_i32_1 = arith.constant 0 : i32
    return %arg0, %c0_i32, %c0_i32_0 : i32, i32, i32
  }
  func.func @transform_10(%arg0: i32) -> (i32, i32, i32) {
    %c0_i32 = arith.constant 0 : i32
    %c0_i32_0 = arith.constant 0 : i32
    %c0_i32_1 = arith.constant 0 : i32
    return %arg0, %c0_i32, %c0_i32_0 : i32, i32, i32
  }
}

</mosaic_0001>

<llo_original>
// kernel: match_block_pallas.1
$region0: #{match_block_pallas.1}
  #allocation0 [shape = 'u32[]', space=smem, size = 0x4, offset = 0x4, fixed_abs, tag = 'smem constant byte address 0x4 - core index']
  #allocation1 [shape = 'u32[72,128]{1,0:T(1,128)}', space=vmem, size = 0x9000, scoped, tag = 'internal scratch']
  %s0 = inlined_call_operand.vmem [shape: f32[2,32,128], index: 0, kind: input, shape index: {}]
  %s1 = inlined_call_operand.vmem [shape: f32[2,32,256], index: 1, kind: input, shape index: {}]
  %s2 = inlined_call_operand.vmem [shape: f32[48,32], index: 2, kind: input, shape index: {}]
  %s3 = inlined_call_operand.vmem [shape: f32[48,1], index: 3, kind: input, shape index: {}]
  %s4 = inlined_call_operand.vmem [shape: f32[64,16], index: 4, kind: input, shape index: {}]
  %s5 = inlined_call_operand.vmem [shape: f32[2,32], index: 5, kind: input, shape index: {}]
  %s6 = inlined_call_operand.vmem [shape: f32[2,1], index: 6, kind: input, shape index: {}]
  %s7 = inlined_call_operand.vmem [shape: f32[32,2], index: 7, kind: input, shape index: {}]
  %s8 = inlined_call_operand.vmem [shape: f32[96,1], index: 8, kind: input, shape index: {}]
  %s9 = inlined_call_operand.vmem [shape: f32[2,32,128], index: 9, kind: output, shape index: {0}]
  %s10 = inlined_call_operand.vmem [shape: f32[2,32,256], index: 10, kind: output, shape index: {1}]
  %11 = xla_tuple %s9, %s10
  %s12 = sld [smem:[#allocation0]]
  $region77: #{match_block_pallas.1} parent=0
    _
  %s14 = ssub.s32 1, %s12
  %s15 = scalar_select 0, %s14, %s12
  loop: start=0, step=1, limit=4
  $region2: #{match_block_pallas.1} parent=0 // loop_pre_header
    _
  $region3: #{match_block_pallas.1} parent=0 // loop_header
    %s17 = sphi 0, %s21
    %p18 = scmp.ge.s32.totalorder %s17, 4
    %s27 = sphi 0, %s29
    %s30 = sphi 0, %s27
    %s31 = sphi 0, %s30
    %s47 = sphi 0, %s31
    %s53 = sphi 0, %s55
    %s56 = sphi 0, %s53
    %s57 = sphi 0, %s56
    %s73 = sphi 0, %s57
    %s77 = sphi 0, %s77
    %s79 = sphi 0, %s77
    %s80 = sphi 0, %s79
    %s94 = sphi 0, %s80
    %s98 = sphi 0, %s98
    %s100 = sphi 0, %s98
    %s101 = sphi 0, %s100
    %s115 = sphi 0, %s101
    %s119 = sphi 0, %s119
    %s121 = sphi 0, %s119
    %s122 = sphi 0, %s121
    %s136 = sphi 0, %s122
    %s140 = sphi 0, %s140
    %s142 = sphi 0, %s140
    %s143 = sphi 0, %s142
    %s157 = sphi 0, %s143
    %s161 = sphi 0, %s161
    %s163 = sphi 0, %s161
    %s164 = sphi 0, %s163
    %s178 = sphi 0, %s164
    %s182 = sphi 0, %s182
    %s184 = sphi 0, %s182
    %s185 = sphi 0, %s184
    %s199 = sphi 0, %s185
    %s203 = sphi 0, %s203
    %s205 = sphi 0, %s203
    %s206 = sphi 0, %s205
    %s220 = sphi 0, %s206
    %s226 = sphi 0, %s228
    %s229 = sphi 0, %s226
    %s230 = sphi 0, %s229
    %s246 = sphi 0, %s230
    %s252 = sphi 0, %s254
    %s255 = sphi 0, %s252
    %s256 = sphi 0, %s255
    %s272 = sphi 0, %s256
  $region4: #{match_block_pallas.1} parent=0 // loop_header_branch
    %20 = sbr.rel (%p18) target = $region8
  $region5: #{match_block_pallas.1} parent=0 // loop_body
    %s22 = ssub.s32 %s17, 1
    %s23 = ssub.s32 %s17, 2
    %s24 = sadd.s32 %s17, 1
    %s25 = ssub.s32 %s17, %s24
    %p26 = scmp.eq.s32.totalorder %s25, 0
    %s28 = sadd.s32 %s27, 1
    %s29 = scalar_select %p26, %s27, %s28
    %p32 = pneg %p26
    %p33 = scmp.eq.s32.totalorder %s17, 1
    %p34 = por %p32, %p33
    %p35 = scmp.ne.s32.totalorder %s27, %s30
    %p36 = scmp.eq.s32.totalorder %s17, 0
    %p37 = por %p35, %p36
    %p38 = scmp.ne.s32.totalorder %s27, %s30
    %p39 = scmp.eq.s32.totalorder %s22, 1
    %p40 = por %p38, %p39
    %p41 = scmp.ne.s32.totalorder %s30, %s31
    %p42 = scmp.eq.s32.totalorder %s22, 0
    %p43 = por %p41, %p42
    %p44 = scmp.ne.s32.totalorder %s30, %s31
    %p45 = scmp.eq.s32.totalorder %s23, 1
    %p46 = por %p44, %p45
    %p48 = scmp.ne.s32.totalorder %s31, %s47
    %p49 = scmp.eq.s32.totalorder %s23, 0
    %p50 = por %p48, %p49
    %s51 = ssub.s32 %s17, %s24
    %p52 = scmp.eq.s32.totalorder %s51, 0
    %s54 = sadd.s32 %s53, 1
    %s55 = scalar_select %p52, %s53, %s54
    %p58 = pneg %p52
    %p59 = scmp.eq.s32.totalorder %s17, 1
    %p60 = por %p58, %p59
    %p61 = scmp.ne.s32.totalorder %s53, %s56
    %p62 = scmp.eq.s32.totalorder %s17, 0
    %p63 = por %p61, %p62
    %p64 = scmp.ne.s32.totalorder %s53, %s56
    %p65 = scmp.eq.s32.totalorder %s22, 1
    %p66 = por %p64, %p65
    %p67 = scmp.ne.s32.totalorder %s56, %s57
    %p68 = scmp.eq.s32.totalorder %s22, 0
    %p69 = por %p67, %p68
    %p70 = scmp.ne.s32.totalorder %s56, %s57
    %p71 = scmp.eq.s32.totalorder %s23, 1
    %p72 = por %p70, %p71
    %p74 = scmp.ne.s32.totalorder %s57, %s73
    %p75 = scmp.eq.s32.totalorder %s23, 0
    %p76 = por %p74, %p75
    %s78 = sadd.s32 %s77, 1
    %p81 = scmp.eq.s32.totalorder %s17, 1
    %p82 = scmp.ne.s32.totalorder %s77, %s79
    %p83 = scmp.eq.s32.totalorder %s17, 0
    %p84 = por %p82, %p83
    %p85 = scmp.ne.s32.totalorder %s77, %s79
    %p86 = scmp.eq.s32.totalorder %s22, 1
    %p87 = por %p85, %p86
    %p88 = scmp.ne.s32.totalorder %s79, %s80
    %p89 = scmp.eq.s32.totalorder %s22, 0
    %p90 = por %p88, %p89
    %p91 = scmp.ne.s32.totalorder %s79, %s80
    %p92 = scmp.eq.s32.totalorder %s23, 1
    %p93 = por %p91, %p92
    %p95 = scmp.ne.s32.totalorder %s80, %s94
    %p96 = scmp.eq.s32.totalorder %s23, 0
    %p97 = por %p95, %p96
    %s99 = sadd.s32 %s98, 1
    %p102 = scmp.eq.s32.totalorder %s17, 1
    %p103 = scmp.ne.s32.totalorder %s98, %s100
    %p104 = scmp.eq.s32.totalorder %s17, 0
    %p105 = por %p103, %p104
    %p106 = scmp.ne.s32.totalorder %s98, %s100
    %p107 = scmp.eq.s32.totalorder %s22, 1
    %p108 = por %p106, %p107
    %p109 = scmp.ne.s32.totalorder %s100, %s101
    %p110 = scmp.eq.s32.totalorder %s22, 0
    %p111 = por %p109, %p110
    %p112 = scmp.ne.s32.totalorder %s100, %s101
    %p113 = scmp.eq.s32.totalorder %s23, 1
    %p114 = por %p112, %p113
    %p116 = scmp.ne.s32.totalorder %s101, %s115
    %p117 = scmp.eq.s32.totalorder %s23, 0
    %p118 = por %p116, %p117
    %s120 = sadd.s32 %s119, 1
    %p123 = scmp.eq.s32.totalorder %s17, 1
    %p124 = scmp.ne.s32.totalorder %s119, %s121
    %p125 = scmp.eq.s32.totalorder %s17, 0
    %p126 = por %p124, %p125
    %p127 = scmp.ne.s32.totalorder %s119, %s121
    %p128 = scmp.eq.s32.totalorder %s22, 1
    %p129 = por %p127, %p128
    %p130 = scmp.ne.s32.totalorder %s121, %s122
    %p131 = scmp.eq.s32.totalorder %s22, 0
    %p132 = por %p130, %p131
    %p133 = scmp.ne.s32.totalorder %s121, %s122
    %p134 = scmp.eq.s32.totalorder %s23, 1
    %p135 = por %p133, %p134
    %p137 = scmp.ne.s32.totalorder %s122, %s136
    %p138 = scmp.eq.s32.totalorder %s23, 0
    %p139 = por %p137, %p138
    %s141 = sadd.s32 %s140, 1
    %p144 = scmp.eq.s32.totalorder %s17, 1
    %p145 = scmp.ne.s32.totalorder %s140, %s142
    %p146 = scmp.eq.s32.totalorder %s17, 0
    %p147 = por %p145, %p146
    %p148 = scmp.ne.s32.totalorder %s140, %s142
    %p149 = scmp.eq.s32.totalorder %s22, 1
    %p150 = por %p148, %p149
    %p151 = scmp.ne.s32.totalorder %s142, %s143
    %p152 = scmp.eq.s32.totalorder %s22, 0
    %p153 = por %p151, %p152
    %p154 = scmp.ne.s32.totalorder %s142, %s143
    %p155 = scmp.eq.s32.totalorder %s23, 1
    %p156 = por %p154, %p155
    %p158 = scmp.ne.s32.totalorder %s143, %s157
    %p159 = scmp.eq.s32.totalorder %s23, 0
    %p160 = por %p158, %p159
    %s162 = sadd.s32 %s161, 1
    %p165 = scmp.eq.s32.totalorder %s17, 1
    %p166 = scmp.ne.s32.totalorder %s161, %s163
    %p167 = scmp.eq.s32.totalorder %s17, 0
    %p168 = por %p166, %p167
    %p169 = scmp.ne.s32.totalorder %s161, %s163
    %p170 = scmp.eq.s32.totalorder %s22, 1
    %p171 = por %p169, %p170
    %p172 = scmp.ne.s32.totalorder %s163, %s164
    %p173 = scmp.eq.s32.totalorder %s22, 0
    %p174 = por %p172, %p173
    %p175 = scmp.ne.s32.totalorder %s163, %s164
    %p176 = scmp.eq.s32.totalorder %s23, 1
    %p177 = por %p175, %p176
    %p179 = scmp.ne.s32.totalorder %s164, %s178
    %p180 = scmp.eq.s32.totalorder %s23, 0
    %p181 = por %p179, %p180
    %s183 = sadd.s32 %s182, 1
    %p186 = scmp.eq.s32.totalorder %s17, 1
    %p187 = scmp.ne.s32.totalorder %s182, %s184
    %p188 = scmp.eq.s32.totalorder %s17, 0
    %p189 = por %p187, %p188
    %p190 = scmp.ne.s32.totalorder %s182, %s184
    %p191 = scmp.eq.s32.totalorder %s22, 1
    %p192 = por %p190, %p191
    %p193 = scmp.ne.s32.totalorder %s184, %s185
    %p194 = scmp.eq.s32.totalorder %s22, 0
    %p195 = por %p193, %p194
    %p196 = scmp.ne.s32.totalorder %s184, %s185
    %p197 = scmp.eq.s32.totalorder %s23, 1
    %p198 = por %p196, %p197
    %p200 = scmp.ne.s32.totalorder %s185, %s199
    %p201 = scmp.eq.s32.totalorder %s23, 0
    %p202 = por %p200, %p201
    %s204 = sadd.s32 %s203, 1
    %p207 = scmp.eq.s32.totalorder %s17, 1
    %p208 = scmp.ne.s32.totalorder %s203, %s205
    %p209 = scmp.eq.s32.totalorder %s17, 0
    %p210 = por %p208, %p209
    %p211 = scmp.ne.s32.totalorder %s203, %s205
    %p212 = scmp.eq.s32.totalorder %s22, 1
    %p213 = por %p211, %p212
    %p214 = scmp.ne.s32.totalorder %s205, %s206
    %p215 = scmp.eq.s32.totalorder %s22, 0
    %p216 = por %p214, %p215
    %p217 = scmp.ne.s32.totalorder %s205, %s206
    %p218 = scmp.eq.s32.totalorder %s23, 1
    %p219 = por %p217, %p218
    %p221 = scmp.ne.s32.totalorder %s206, %s220
    %p222 = scmp.eq.s32.totalorder %s23, 0
    %p223 = por %p221, %p222
    %s224 = ssub.s32 %s17, %s24
    %p225 = scmp.eq.s32.totalorder %s224, 0
    %s227 = sadd.s32 %s226, 1
    %s228 = scalar_select %p225, %s226, %s227
    %p231 = pneg %p225
    %p232 = scmp.eq.s32.totalorder %s17, 1
    %p233 = por %p231, %p232
    %p234 = scmp.ne.s32.totalorder %s226, %s229
    %p235 = scmp.eq.s32.totalorder %s17, 0
    %p236 = por %p234, %p235
    %p237 = scmp.ne.s32.totalorder %s226, %s229
    %p238 = scmp.eq.s32.totalorder %s22, 1
    %p239 = por %p237, %p238
    %p240 = scmp.ne.s32.totalorder %s229, %s230
    %p241 = scmp.eq.s32.totalorder %s22, 0
    %p242 = por %p240, %p241
    %p243 = scmp.ne.s32.totalorder %s229, %s230
    %p244 = scmp.eq.s32.totalorder %s23, 1
    %p245 = por %p243, %p244
    %p247 = scmp.ne.s32.totalorder %s230, %s246
    %p248 = scmp.eq.s32.totalorder %s23, 0
    %p249 = por %p247, %p248
    %s250 = ssub.s32 %s17, %s24
    %p251 = scmp.eq.s32.totalorder %s250, 0
    %s253 = sadd.s32 %s252, 1
    %s254 = scalar_select %p251, %s252, %s253
    %p257 = pneg %p251
    %p258 = scmp.eq.s32.totalorder %s17, 1
    %p259 = por %p257, %p258
    %p260 = scmp.ne.s32.totalorder %s252, %s255
    %p261 = scmp.eq.s32.totalorder %s17, 0
    %p262 = por %p260, %p261
    %p263 = scmp.ne.s32.totalorder %s252, %s255
    %p264 = scmp.eq.s32.totalorder %s22, 1
    %p265 = por %p263, %p264
    %p266 = scmp.ne.s32.totalorder %s255, %s256
    %p267 = scmp.eq.s32.totalorder %s22, 0
    %p268 = por %p266, %p267
    %p269 = scmp.ne.s32.totalorder %s255, %s256
    %p270 = scmp.eq.s32.totalorder %s23, 1
    %p271 = por %p269, %p270
    %p273 = scmp.ne.s32.totalorder %s256, %s272
    %p274 = scmp.eq.s32.totalorder %s23, 0
    %p275 = por %p273, %p274
    %p276 = scmp.le.s32.totalorder 1, %s17
    %p277 = scmp.lt.s32.totalorder %s17, 3
    %p278 = pnand %p276, %p277
    %p279 = pneg %p278
    // Predicated region
    $region9: #{match_block_pallas.1} parent=5 // pred_check
      _
    $region10: #{match_block_pallas.1} parent=5 // pred_check_branch
      %281 = sbr.rel (%p278) target = $region12
    $region11: #{match_block_pallas.1} parent=5 // pred_region
      %s282 = ssub.s32 %s17, 1
      // Predicated region
      $region13: #{match_block_pallas.1} parent=11 // pred_check
        %p283 = pneg %p90
      $region14: #{match_block_pallas.1} parent=11 // pred_check_branch
        %285 = sbr.rel (%p283) target = $region16
      $region15: #{match_block_pallas.1} parent=11 // pred_region
        _
      $region16: #{match_block_pallas.1} parent=11 // pred_fallthru
        _
      // Predicated region
      $region17: #{match_block_pallas.1} parent=11 // pred_check
        %p286 = pneg %p111
      $region18: #{match_block_pallas.1} parent=11 // pred_check_branch
        %288 = sbr.rel (%p286) target = $region20
      $region19: #{match_block_pallas.1} parent=11 // pred_region
        _
      $region20: #{match_block_pallas.1} parent=11 // pred_fallthru
        _
      // Predicated region
      $region21: #{match_block_pallas.1} parent=11 // pred_check
        %p289 = pneg %p132
      $region22: #{match_block_pallas.1} parent=11 // pred_check_branch
        %291 = sbr.rel (%p289) target = $region24
      $region23: #{match_block_pallas.1} parent=11 // pred_region
        _
      $region24: #{match_block_pallas.1} parent=11 // pred_fallthru
        _
      // Predicated region
      $region25: #{match_block_pallas.1} parent=11 // pred_check
        %p292 = pneg %p153
      $region26: #{match_block_pallas.1} parent=11 // pred_check_branch
        %294 = sbr.rel (%p292) target = $region28
      $region27: #{match_block_pallas.1} parent=11 // pred_region
        _
      $region28: #{match_block_pallas.1} parent=11 // pred_fallthru
        _
      // Predicated region
      $region29: #{match_block_pallas.1} parent=11 // pred_check
        %p295 = pneg %p174
      $region30: #{match_block_pallas.1} parent=11 // pred_check_branch
        %297 = sbr.rel (%p295) target = $region32
      $region31: #{match_block_pallas.1} parent=11 // pred_region
        _
      $region32: #{match_block_pallas.1} parent=11 // pred_fallthru
        _
      // Predicated region
      $region33: #{match_block_pallas.1} parent=11 // pred_check
        %p298 = pneg %p195
      $region34: #{match_block_pallas.1} parent=11 // pred_check_branch
        %300 = sbr.rel (%p298) target = $region36
      $region35: #{match_block_pallas.1} parent=11 // pred_region
        _
      $region36: #{match_block_pallas.1} parent=11 // pred_fallthru
        _
      // Predicated region
      $region37: #{match_block_pallas.1} parent=11 // pred_check
        %p301 = pneg %p216
      $region38: #{match_block_pallas.1} parent=11 // pred_check_branch
        %303 = sbr.rel (%p301) target = $region40
      $region39: #{match_block_pallas.1} parent=11 // pred_region
        _
      $region40: #{match_block_pallas.1} parent=11 // pred_fallthru
        _
    $region12: #{match_block_pallas.1} parent=5 // pred_fallthru
      _
    %p304 = scmp.lt.s32.totalorder %s17, 2
    // Predicated region
    $region41: #{match_block_pallas.1} parent=5 // pred_check
      %p305 = pneg %p304
    $region42: #{match_block_pallas.1} parent=5 // pred_check_branch
      %307 = sbr.rel (%p305) target = $region44
    $region43: #{match_block_pallas.1} parent=5 // pred_region
      // Predicated region
      $region45: #{match_block_pallas.1} parent=43 // pred_check
        %p308 = pneg %p37
      $region46: #{match_block_pallas.1} parent=43 // pred_check_branch
        %310 = sbr.rel (%p308) target = $region48
      $region47: #{match_block_pallas.1} parent=43 // pred_region
        %p311 = scmp.lt.s32.totalorder %s17, 1
        %s312 = scalar_select %p311, %s17, 1
        %s313 = smul.addr %s312, 4
        %s314 = smul.addr %s313, 8
        %s315 = scalar_lea.vmem %s0, %s314
      $region48: #{match_block_pallas.1} parent=43 // pred_fallthru
        _
      // Predicated region
      $region49: #{match_block_pallas.1} parent=43 // pred_check
        %p316 = pneg %p63
      $region50: #{match_block_pallas.1} parent=43 // pred_check_branch
        %318 = sbr.rel (%p316) target = $region52
      $region51: #{match_block_pallas.1} parent=43 // pred_region
        %p319 = scmp.lt.s32.totalorder %s17, 1
        %s320 = scalar_select %p319, %s17, 1
        %s321 = smul.addr %s320, 8
        %s322 = smul.addr %s321, 8
        %s323 = scalar_lea.vmem %s1, %s322
      $region52: #{match_block_pallas.1} parent=43 // pred_fallthru
        _
    $region44: #{match_block_pallas.1} parent=5 // pred_fallthru
      _
    %p324 = scmp.le.s32.totalorder 1, %s17
    %p325 = scmp.lt.s32.totalorder %s17, 3
    %p326 = pnand %p324, %p325
    %p327 = pneg %p326
    // Predicated region
    $region53: #{match_block_pallas.1} parent=5 // pred_check
      _
    $region54: #{match_block_pallas.1} parent=5 // pred_check_branch
      %329 = sbr.rel (%p326) target = $region56
    $region55: #{match_block_pallas.1} parent=5 // pred_region
      %s330 = ssub.s32 %s17, 1
      %p331 = scmp.lt.s32.totalorder %s22, 1
      %s332 = scalar_select %p331, %s22, 1
      %s333 = smul.addr %s332, 4
      %s334 = smul.addr %s333, 8
      %s335 = scalar_lea.vmem %s0, %s334
      %p336 = pneg %p43
      %p337 = pneg %p40
      %p338 = scmp.lt.s32.totalorder %s22, 1
      %s339 = scalar_select %p338, %s22, 1
      %s340 = smul.addr %s339, 8
      %s341 = smul.addr %s340, 8
      %s342 = scalar_lea.vmem %s1, %s341
      %p343 = pneg %p69
      %p344 = pneg %p66
      %p345 = pneg %p90
      %p346 = pneg %p87
      %p347 = pneg %p111
      %p348 = pneg %p108
      %p349 = pneg %p132
      %p350 = pneg %p129
      %p351 = pneg %p153
      %p352 = pneg %p150
      %p353 = pneg %p174
      %p354 = pneg %p171
      %p355 = pneg %p195
      %p356 = pneg %p192
      %p357 = pneg %p216
      %p358 = pneg %p213
      %p359 = pneg %p242
      %p360 = pneg %p239
      %p361 = scmp.lt.s32.totalorder %s22, 1
      %s362 = scalar_select %p361, %s22, 1
      %s363 = smul.addr %s362, 4
      %s364 = smul.addr %s363, 8
      %s365 = scalar_lea.vmem %s9, %s364
      %p366 = pneg %p268
      %p367 = pneg %p265
      %p368 = scmp.lt.s32.totalorder %s22, 1
      %s369 = scalar_select %p368, %s22, 1
      %s370 = smul.addr %s369, 8
      %s371 = smul.addr %s370, 8
      %s372 = scalar_lea.vmem %s10, %s371
      %p373 = scmp.lt.s32.totalorder %s22, 1
      %s374 = scalar_select %p373, %s22, 1
      %s375 = smul.addr %s374, 4
      %s376 = smul.addr %s375, 8
      %s377 = scalar_lea.vmem %s0, %s376
      %p378 = scmp.lt.s32.totalorder %s22, 1
      %s379 = scalar_select %p378, %s22, 1
      %s380 = smul.addr %s379, 8
      %s381 = smul.addr %s380, 8
      %s382 = scalar_lea.vmem %s1, %s381
      %p383 = scmp.lt.s32.totalorder %s22, 1
      %s384 = scalar_select %p383, %s22, 1
      %s385 = smul.addr %s384, 4
      %s386 = smul.addr %s385, 8
      %s387 = scalar_lea.vmem %s9, %s386
      %p388 = scmp.lt.s32.totalorder %s22, 1
      %s389 = scalar_select %p388, %s22, 1
      %s390 = smul.addr %s389, 8
      %s391 = smul.addr %s390, 8
      %s392 = scalar_lea.vmem %s10, %s391
      %v393 = vld [vmem:[%s377] sm:$0xff]
      %v394 = vld [vmem:[%s377 + $0x8] sm:$0xff]
      %v395 = vld [vmem:[%s377 + $0x10] sm:$0xff]
      %v396 = vld [vmem:[%s377 + $0x18] sm:$0xff]
      %v397 = vld [vmem:[%s382] sm:$0xff]
      %v398 = vld [vmem:[%s382 + $0x8] sm:$0xff]
      %v399 = vld [vmem:[%s382 + $0x10] sm:$0xff]
      %v400 = vld [vmem:[%s382 + $0x18] sm:$0xff]
      %v401 = vld [vmem:[%s382 + $0x20] sm:$0xff]
      %v402 = vld [vmem:[%s382 + $0x28] sm:$0xff]
      %v403 = vld [vmem:[%s382 + $0x30] sm:$0xff]
      %v404 = vld [vmem:[%s382 + $0x38] sm:$0xff]
      %v405 = vld [vmem:[%s2] sm:$0xff]
      %v406 = vld [vmem:[%s2 + $0x8] sm:$0xff]
      %v407 = vld [vmem:[%s2 + $0x10] sm:$0xff]
      %v408 = vld [vmem:[%s2 + $0x18] sm:$0xff]
      %v409 = vld [vmem:[%s2 + $0x20] sm:$0xff]
      %v410 = vld [vmem:[%s2 + $0x28] sm:$0xff]
      %v411 = vld [vmem:[%s3] sm:$0xff]
      %v412 = vld [vmem:[%s3 + $0x8] sm:$0xff]
      %v413 = vld [vmem:[%s3 + $0x10] sm:$0xff]
      %v414 = vld [vmem:[%s3 + $0x18] sm:$0xff]
      %v415 = vld [vmem:[%s3 + $0x20] sm:$0xff]
      %v416 = vld [vmem:[%s3 + $0x28] sm:$0xff]
      %418 = vset.pattern.permute.xlu0 0
      %419 = vperm.xlu0 %418, %v411
      %v420 = vpop.permute.xlu0 %419
      %423 = vset.pattern.permute.xlu0 0
      %424 = vperm.xlu0 %423, %v412
      %v425 = vpop.permute.xlu0 %424
      %428 = vset.pattern.permute.xlu0 0
      %429 = vperm.xlu0 %428, %v413
      %v430 = vpop.permute.xlu0 %429
      %433 = vset.pattern.permute.xlu0 0
      %434 = vperm.xlu0 %433, %v414
      %v435 = vpop.permute.xlu0 %434
      %438 = vset.pattern.permute.xlu0 0
      %439 = vperm.xlu0 %438, %v415
      %v440 = vpop.permute.xlu0 %439
      %443 = vset.pattern.permute.xlu0 0
      %444 = vperm.xlu0 %443, %v416
      %v445 = vpop.permute.xlu0 %444
      %vm447 = vcmask 261120
      %v449 = vsel %vm447, %v405, 0
      %v452 = vsel %vm447, %v406, 0
      %v455 = vsel %vm447, %v407, 0
      %v458 = vsel %vm447, %v408, 0
      %v461 = vsel %vm447, %v409, 0
      %v464 = vsel %vm447, %v410, 0
      %466 = vmatpush.msra.mxu0 0.0
      %467 = vmatpush.msra.mxu0 0.0
      %468 = vmatpush.msra.mxu0 0.0
      %469 = vmatpush.msra.mxu0 0.0
      %470 = vmatpush.msra.mxu0 0.0
      %471 = vmatpush.msra.mxu0 0.0
      %472 = vmatpush.msra.mxu0 0.0
      %473 = vmatpush.msra.mxu0 0.0
      %474 = vmatpush.msra.mxu0 0.0
      %475 = vmatpush.msra.mxu0 0.0
      %476 = vmatpush.msra.mxu0 0.0
      %477 = vmatpush.msra.mxu0 0.0
      %478 = vmatpush.msra.mxu0 %v396
      %479 = vmatpush.msra.mxu0 %v395
      %480 = vmatpush.msra.mxu0 %v394
      %481 = vmatpush.msra.mxu0 %v393
      %482 = vmatmul.f32.gmra.mxu0 %v449
      %v483 = vpop.f32.mrf.mxu0
      %v484 = vadd.f32 %v420, %v483
      %485 = vmatmul.f32.gmra.mxu0 %v452
      %v486 = vpop.f32.mrf.mxu0
      %v487 = vadd.f32 %v425, %v486
      %488 = vmatmul.f32.gmra.mxu0 %v455
      %v489 = vpop.f32.mrf.mxu0
      %v490 = vadd.f32 %v430, %v489
      %491 = vmatmul.f32.gmra.mxu0 %v458
      %v492 = vpop.f32.mrf.mxu0
      %v493 = vadd.f32 %v435, %v492
      %494 = vmatmul.f32.gmra.mxu0 %v461
      %v495 = vpop.f32.mrf.mxu0
      %496 = vmatmul.f32.gmra.mxu0 %v464
      %v497 = vpop.f32.mrf.mxu0
      %498 = vdwg.mxu0
      %499 = vmatpush.msra.mxu0 0.0
      %500 = vmatpush.msra.mxu0 0.0
      %501 = vmatpush.msra.mxu0 0.0
      %502 = vmatpush.msra.mxu0 0.0
      %503 = vmatpush.msra.mxu0 0.0
      %504 = vmatpush.msra.mxu0 0.0
      %505 = vmatpush.msra.mxu0 0.0
      %506 = vmatpush.msra.mxu0 0.0
      %507 = vmatpush.msra.mxu0 0.0
      %508 = vmatpush.msra.mxu0 0.0
      %509 = vmatpush.msra.mxu0 0.0
      %510 = vmatpush.msra.mxu0 0.0
      %511 = vmatpush.msra.mxu0 %v403
      %512 = vmatpush.msra.mxu0 %v401
      %513 = vmatpush.msra.mxu0 %v399
      %514 = vmatpush.msra.mxu0 %v397
      %515 = vmatmul.f32.gmra.mxu0 %v449
      %v516 = vpop.f32.mrf.mxu0
      %v517 = vadd.f32 %v420, %v516
      %518 = vmatmul.f32.gmra.mxu0 %v452
      %v519 = vpop.f32.mrf.mxu0
      %v520 = vadd.f32 %v425, %v519
      %521 = vmatmul.f32.gmra.mxu0 %v455
      %v522 = vpop.f32.mrf.mxu0
      %523 = vmatmul.f32.gmra.mxu0 %v458
      %v524 = vpop.f32.mrf.mxu0
      %525 = vmatmul.f32.gmra.mxu0 %v461
      %v526 = vpop.f32.mrf.mxu0
      %v527 = vadd.f32 %v440, %v526
      %528 = vmatmul.f32.gmra.mxu0 %v464
      %v529 = vpop.f32.mrf.mxu0
      %v530 = vadd.f32 %v445, %v529
      %531 = vdwg.mxu0
      %532 = vmatpush.msra.mxu0 0.0
      %533 = vmatpush.msra.mxu0 0.0
      %534 = vmatpush.msra.mxu0 0.0
      %535 = vmatpush.msra.mxu0 0.0
      %536 = vmatpush.msra.mxu0 0.0
      %537 = vmatpush.msra.mxu0 0.0
      %538 = vmatpush.msra.mxu0 0.0
      %539 = vmatpush.msra.mxu0 0.0
      %540 = vmatpush.msra.mxu0 0.0
      %541 = vmatpush.msra.mxu0 0.0
      %542 = vmatpush.msra.mxu0 0.0
      %543 = vmatpush.msra.mxu0 0.0
      %544 = vmatpush.msra.mxu0 %v404
      %545 = vmatpush.msra.mxu0 %v402
      %546 = vmatpush.msra.mxu0 %v400
      %547 = vmatpush.msra.mxu0 %v398
      %548 = vmatmul.f32.gmra.mxu0 %v449
      %v549 = vpop.f32.mrf.mxu0
      %v550 = vadd.f32 %v420, %v549
      %551 = vmatmul.f32.gmra.mxu0 %v452
      %v552 = vpop.f32.mrf.mxu0
      %v553 = vadd.f32 %v425, %v552
      %554 = vmatmul.f32.gmra.mxu0 %v455
      %v555 = vpop.f32.mrf.mxu0
      %556 = vmatmul.f32.gmra.mxu0 %v458
      %v557 = vpop.f32.mrf.mxu0
      %558 = vmatmul.f32.gmra.mxu0 %v461
      %v559 = vpop.f32.mrf.mxu0
      %v560 = vadd.f32 %v440, %v559
      %561 = vmatmul.f32.gmra.mxu0 %v464
      %v562 = vpop.f32.mrf.mxu0
      %v563 = vadd.f32 %v445, %v562
      %564 = vdwg.mxu0
      %565 = vmatpush.xpose.msra.mxu0 0.0
      %566 = vmatpush.xpose.msra.mxu0 0.0
      %567 = vmatpush.xpose.msra.mxu0 0.0
      %568 = vmatpush.xpose.msra.mxu0 0.0
      %569 = vmatpush.xpose.msra.mxu0 0.0
      %570 = vmatpush.xpose.msra.mxu0 0.0
      %571 = vmatpush.xpose.msra.mxu0 0.0
      %572 = vmatpush.xpose.msra.mxu0 0.0
      %573 = vmatpush.xpose.msra.mxu0 0.0
      %574 = vmatpush.xpose.msra.mxu0 0.0
      %575 = vmatpush.xpose.msra.mxu0 0.0
      %576 = vmatpush.xpose.msra.mxu0 0.0
      %577 = vmatpush.xpose.msra.mxu0 0.0
      %578 = vmatpush.xpose.msra.mxu0 0.0
      %579 = vmatpush.xpose.msra.mxu0 %v530
      %580 = vmatpush.xpose.msra.mxu0 %v527
      %581 = vmatmul.f32.gmra.mxu0 %v517
      %v582 = vpop.f32.mrf.mxu0
      %v583 = vadd.f32 0.0, %v582
      %584 = vmatmul.f32.gmra.mxu0 %v520
      %v585 = vpop.f32.mrf.mxu0
      %v586 = vadd.f32 0.0, %v585
      %587 = vdwg.mxu0
      %588 = vmatpush.xpose.msra.mxu0 0.0
      %589 = vmatpush.xpose.msra.mxu0 0.0
      %590 = vmatpush.xpose.msra.mxu0 0.0
      %591 = vmatpush.xpose.msra.mxu0 0.0
      %592 = vmatpush.xpose.msra.mxu0 0.0
      %593 = vmatpush.xpose.msra.mxu0 0.0
      %594 = vmatpush.xpose.msra.mxu0 0.0
      %595 = vmatpush.xpose.msra.mxu0 0.0
      %596 = vmatpush.xpose.msra.mxu0 0.0
      %597 = vmatpush.xpose.msra.mxu0 0.0
      %598 = vmatpush.xpose.msra.mxu0 0.0
      %599 = vmatpush.xpose.msra.mxu0 0.0
      %600 = vmatpush.xpose.msra.mxu0 0.0
      %601 = vmatpush.xpose.msra.mxu0 0.0
      %602 = vmatpush.xpose.msra.mxu0 %v563
      %603 = vmatpush.xpose.msra.mxu0 %v560
      %604 = vmatmul.f32.gmra.mxu0 %v550
      %v605 = vpop.f32.mrf.mxu0
      %v606 = vadd.f32 %v583, %v605
      %607 = vmatmul.f32.gmra.mxu0 %v553
      %v608 = vpop.f32.mrf.mxu0
      %v609 = vadd.f32 %v586, %v608
      %610 = vdwg.mxu0
      %611 = vmatpush.xpose.msra.mxu0 0.0
      %612 = vmatpush.xpose.msra.mxu0 0.0
      %613 = vmatpush.xpose.msra.mxu0 0.0
      %614 = vmatpush.xpose.msra.mxu0 0.0
      %615 = vmatpush.xpose.msra.mxu0 0.0
      %616 = vmatpush.xpose.msra.mxu0 0.0
      %617 = vmatpush.xpose.msra.mxu0 0.0
      %618 = vmatpush.xpose.msra.mxu0 0.0
      %619 = vmatpush.xpose.msra.mxu0 0.0
      %620 = vmatpush.xpose.msra.mxu0 0.0
      %621 = vmatpush.xpose.msra.mxu0 0.0
      %622 = vmatpush.xpose.msra.mxu0 0.0
      %623 = vmatpush.xpose.msra.mxu0 0.0
      %624 = vmatpush.xpose.msra.mxu0 0.0
      %625 = vmatpush.xpose.msra.mxu0 %v493
      %626 = vmatpush.xpose.msra.mxu0 %v490
      %627 = vmatmul.f32.gmra.mxu0 %v484
      %v628 = vpop.f32.mrf.mxu0
      %v629 = vadd.f32 0.0, %v628
      %630 = vmatmul.f32.gmra.mxu0 %v487
      %v631 = vpop.f32.mrf.mxu0
      %v632 = vadd.f32 0.0, %v631
      %633 = vdwg.mxu0
      %vm634 = vcmask 130048
      %v636 = vsel %vm634, %v606, 0
      %v639 = vsel %vm634, %v609, 0
      %641 = vmatpush.msra.mxu0 0.0
      %642 = vmatpush.msra.mxu0 0.0
      %643 = vmatpush.msra.mxu0 0.0
      %644 = vmatpush.msra.mxu0 0.0
      %645 = vmatpush.msra.mxu0 0.0
      %646 = vmatpush.msra.mxu0 0.0
      %647 = vmatpush.msra.mxu0 0.0
      %648 = vmatpush.msra.mxu0 0.0
      %649 = vmatpush.msra.mxu0 0.0
      %650 = vmatpush.msra.mxu0 0.0
      %651 = vmatpush.msra.mxu0 0.0
      %652 = vmatpush.msra.mxu0 0.0
      %653 = vmatpush.msra.mxu0 0.0
      %654 = vmatpush.msra.mxu0 0.0
      %655 = vmatpush.msra.mxu0 %v493
      %656 = vmatpush.msra.mxu0 %v490
      %657 = vmatmul.f32.gmra.mxu0 %v636
      %v658 = vpop.f32.mrf.mxu0
      %v659 = vadd.f32 0.0, %v658
      %660 = vmatmul.f32.gmra.mxu0 %v639
      %v661 = vpop.f32.mrf.mxu0
      %v662 = vadd.f32 0.0, %v661
      %663 = vdwg.mxu0
      %v664 = vmul.f32 %v659, 0.00390625
      %v665 = vmul.f32 %v662, 0.00390625
      %v667 = vsel %vm634, %v629, 0
      %v670 = vsel %vm634, %v632, 0
      %672 = vmatpush.msra.mxu0 0.0
      %673 = vmatpush.msra.mxu0 0.0
      %674 = vmatpush.msra.mxu0 0.0
      %675 = vmatpush.msra.mxu0 0.0
      %676 = vmatpush.msra.mxu0 0.0
      %677 = vmatpush.msra.mxu0 0.0
      %678 = vmatpush.msra.mxu0 0.0
      %679 = vmatpush.msra.mxu0 0.0
      %680 = vmatpush.msra.mxu0 0.0
      %681 = vmatpush.msra.mxu0 0.0
      %682 = vmatpush.msra.mxu0 0.0
      %683 = vmatpush.msra.mxu0 0.0
      %684 = vmatpush.msra.mxu0 0.0
      %685 = vmatpush.msra.mxu0 0.0
      %686 = vmatpush.msra.mxu0 %v530
      %687 = vmatpush.msra.mxu0 %v527
      %688 = vmatmul.f32.gmra.mxu0 %v667
      %v689 = vpop.f32.mrf.mxu0
      %v690 = vadd.f32 0.0, %v689
      %691 = vmatmul.f32.gmra.mxu0 %v670
      %v692 = vpop.f32.mrf.mxu0
      %v693 = vadd.f32 0.0, %v692
      %694 = vdwg.mxu0
      %695 = vmatpush.msra.mxu0 0.0
      %696 = vmatpush.msra.mxu0 0.0
      %697 = vmatpush.msra.mxu0 0.0
      %698 = vmatpush.msra.mxu0 0.0
      %699 = vmatpush.msra.mxu0 0.0
      %700 = vmatpush.msra.mxu0 0.0
      %701 = vmatpush.msra.mxu0 0.0
      %702 = vmatpush.msra.mxu0 0.0
      %703 = vmatpush.msra.mxu0 0.0
      %704 = vmatpush.msra.mxu0 0.0
      %705 = vmatpush.msra.mxu0 0.0
      %706 = vmatpush.msra.mxu0 0.0
      %707 = vmatpush.msra.mxu0 0.0
      %708 = vmatpush.msra.mxu0 0.0
      %709 = vmatpush.msra.mxu0 %v563
      %710 = vmatpush.msra.mxu0 %v560
      %711 = vmatmul.f32.gmra.mxu0 %v667
      %v712 = vpop.f32.mrf.mxu0
      %v713 = vadd.f32 0.0, %v712
      %714 = vmatmul.f32.gmra.mxu0 %v670
      %v715 = vpop.f32.mrf.mxu0
      %v716 = vadd.f32 0.0, %v715
      %717 = vdwg.mxu0
      %v718 = vmul.f32 %v690, 0.0078125
      %v719 = vmul.f32 %v713, 0.0078125
      %v720 = vmul.f32 %v693, 0.0078125
      %v721 = vmul.f32 %v716, 0.0078125
      %v722 = vld [vmem:[%s4] sm:$0xff]
      %v723 = vld [vmem:[%s4 + $0x8] sm:$0xff]
      %v724 = vld [vmem:[%s4 + $0x10] sm:$0xff]
      %v725 = vld [vmem:[%s4 + $0x18] sm:$0xff]
      %v726 = vld [vmem:[%s4 + $0x20] sm:$0xff]
      %v727 = vld [vmem:[%s4 + $0x28] sm:$0xff]
      %v728 = vld [vmem:[%s4 + $0x30] sm:$0xff]
      %v729 = vld [vmem:[%s4 + $0x38] sm:$0xff]
      %v730 = vld [vmem:[%s8] sm:$0xff]
      %v731 = vld [vmem:[%s8 + $0x8] sm:$0xff]
      %v732 = vld [vmem:[%s8 + $0x10] sm:$0xff]
      %v733 = vld [vmem:[%s8 + $0x18] sm:$0xff]
      %v734 = vld [vmem:[%s8 + $0x20] sm:$0xff]
      %v735 = vld [vmem:[%s8 + $0x28] sm:$0xff]
      %v736 = vld [vmem:[%s8 + $0x30] sm:$0xff]
      %v737 = vld [vmem:[%s8 + $0x38] sm:$0xff]
      %v738 = vld [vmem:[%s8 + $0x40] sm:$0xff]
      %v739 = vld [vmem:[%s8 + $0x48] sm:$0xff]
      %v740 = vld [vmem:[%s8 + $0x50] sm:$0xff]
      %v741 = vld [vmem:[%s8 + $0x58] sm:$0xff]
      %743 = vset.pattern.permute.xlu0 0
      %744 = vperm.xlu0 %743, %v730
      %v745 = vpop.permute.xlu0 %744
      %748 = vset.pattern.permute.xlu0 0
      %749 = vperm.xlu0 %748, %v731
      %v750 = vpop.permute.xlu0 %749
      %753 = vset.pattern.permute.xlu0 0
      %754 = vperm.xlu0 %753, %v732
      %v755 = vpop.permute.xlu0 %754
      %758 = vset.pattern.permute.xlu0 0
      %759 = vperm.xlu0 %758, %v733
      %v760 = vpop.permute.xlu0 %759
      %v763 = vsel %vm634, %v722, 0
      %v766 = vsel %vm634, %v723, 0
      %v769 = vsel %vm634, %v724, 0
      %v772 = vsel %vm634, %v725, 0
      %774 = vmatpush.msra.mxu0 0.0
      %775 = vmatpush.msra.mxu0 0.0
      %776 = vmatpush.msra.mxu0 0.0
      %777 = vmatpush.msra.mxu0 0.0
      %778 = vmatpush.msra.mxu0 0.0
      %779 = vmatpush.msra.mxu0 0.0
      %780 = vmatpush.msra.mxu0 0.0
      %781 = vmatpush.msra.mxu0 0.0
      %782 = vmatpush.msra.mxu0 0.0
      %783 = vmatpush.msra.mxu0 0.0
      %784 = vmatpush.msra.mxu0 0.0
      %785 = vmatpush.msra.mxu0 0.0
      %786 = vmatpush.msra.mxu0 0.0
      %787 = vmatpush.msra.mxu0 0.0
      %788 = vmatpush.msra.mxu0 %v665
      %789 = vmatpush.msra.mxu0 %v664
      %790 = vmatmul.f32.gmra.mxu0 %v763
      %v791 = vpop.f32.mrf.mxu0
      %v792 = vadd.f32 %v745, %v791
      %793 = vmatmul.f32.gmra.mxu0 %v766
      %v794 = vpop.f32.mrf.mxu0
      %v795 = vadd.f32 %v750, %v794
      %796 = vmatmul.f32.gmra.mxu0 %v769
      %v797 = vpop.f32.mrf.mxu0
      %v798 = vadd.f32 %v755, %v797
      %799 = vmatmul.f32.gmra.mxu0 %v772
      %v800 = vpop.f32.mrf.mxu0
      %v801 = vadd.f32 %v760, %v800
      %802 = vdwg.mxu0
      %v803 = vadd.f32 %v792, %v393
      %v804 = vadd.f32 %v795, %v394
      %v805 = vadd.f32 %v798, %v395
      %v806 = vadd.f32 %v801, %v396
      %808 = vset.pattern.permute.xlu0 0
      %809 = vperm.xlu0 %808, %v734
      %v810 = vpop.permute.xlu0 %809
      %813 = vset.pattern.permute.xlu0 0
      %814 = vperm.xlu0 %813, %v735
      %v815 = vpop.permute.xlu0 %814
      %818 = vset.pattern.permute.xlu0 0
      %819 = vperm.xlu0 %818, %v736
      %v820 = vpop.permute.xlu0 %819
      %823 = vset.pattern.permute.xlu0 0
      %824 = vperm.xlu0 %823, %v737
      %v825 = vpop.permute.xlu0 %824
      %v828 = vsel %vm634, %v726, 0
      %v831 = vsel %vm634, %v727, 0
      %v834 = vsel %vm634, %v728, 0
      %v837 = vsel %vm634, %v729, 0
      %839 = vmatpush.msra.mxu0 0.0
      %840 = vmatpush.msra.mxu0 0.0
      %841 = vmatpush.msra.mxu0 0.0
      %842 = vmatpush.msra.mxu0 0.0
      %843 = vmatpush.msra.mxu0 0.0
      %844 = vmatpush.msra.mxu0 0.0
      %845 = vmatpush.msra.mxu0 0.0
      %846 = vmatpush.msra.mxu0 0.0
      %847 = vmatpush.msra.mxu0 0.0
      %848 = vmatpush.msra.mxu0 0.0
      %849 = vmatpush.msra.mxu0 0.0
      %850 = vmatpush.msra.mxu0 0.0
      %851 = vmatpush.msra.mxu0 0.0
      %852 = vmatpush.msra.mxu0 0.0
      %853 = vmatpush.msra.mxu0 %v720
      %854 = vmatpush.msra.mxu0 %v718
      %855 = vmatmul.f32.gmra.mxu0 %v828
      %v856 = vpop.f32.mrf.mxu0
      %v857 = vadd.f32 %v810, %v856
      %858 = vmatmul.f32.gmra.mxu0 %v831
      %v859 = vpop.f32.mrf.mxu0
      %v860 = vadd.f32 %v815, %v859
      %861 = vmatmul.f32.gmra.mxu0 %v834
      %v862 = vpop.f32.mrf.mxu0
      %v863 = vadd.f32 %v820, %v862
      %864 = vmatmul.f32.gmra.mxu0 %v837
      %v865 = vpop.f32.mrf.mxu0
      %v866 = vadd.f32 %v825, %v865
      %867 = vdwg.mxu0
      %868 = vmatpush.msra.mxu0 0.0
      %869 = vmatpush.msra.mxu0 0.0
      %870 = vmatpush.msra.mxu0 0.0
      %871 = vmatpush.msra.mxu0 0.0
      %872 = vmatpush.msra.mxu0 0.0
      %873 = vmatpush.msra.mxu0 0.0
      %874 = vmatpush.msra.mxu0 0.0
      %875 = vmatpush.msra.mxu0 0.0
      %876 = vmatpush.msra.mxu0 0.0
      %877 = vmatpush.msra.mxu0 0.0
      %878 = vmatpush.msra.mxu0 0.0
      %879 = vmatpush.msra.mxu0 0.0
      %880 = vmatpush.msra.mxu0 0.0
      %881 = vmatpush.msra.mxu0 0.0
      %882 = vmatpush.msra.mxu0 %v721
      %883 = vmatpush.msra.mxu0 %v719
      %884 = vmatmul.f32.gmra.mxu0 %v828
      %v885 = vpop.f32.mrf.mxu0
      %v886 = vadd.f32 %v810, %v885
      %887 = vmatmul.f32.gmra.mxu0 %v831
      %v888 = vpop.f32.mrf.mxu0
      %v889 = vadd.f32 %v815, %v888
      %890 = vmatmul.f32.gmra.mxu0 %v834
      %v891 = vpop.f32.mrf.mxu0
      %v892 = vadd.f32 %v820, %v891
      %893 = vmatmul.f32.gmra.mxu0 %v837
      %v894 = vpop.f32.mrf.mxu0
      %v895 = vadd.f32 %v825, %v894
      %896 = vdwg.mxu0
      %v897 = vadd.f32 %v857, %v397
      %v898 = vadd.f32 %v886, %v398
      %v899 = vadd.f32 %v860, %v399
      %v900 = vadd.f32 %v889, %v400
      %v901 = vadd.f32 %v863, %v401
      %v902 = vadd.f32 %v892, %v402
      %v903 = vadd.f32 %v866, %v403
      %v904 = vadd.f32 %v895, %v404
      %905 = vadd.xlane.f32.xlu0 %v803
      %v906 = vpop.xlane.xlu0 %905
      %907 = vadd.xlane.f32.xlu0 %v804
      %v908 = vpop.xlane.xlu0 %907
      %909 = vadd.xlane.f32.xlu0 %v805
      %v910 = vpop.xlane.xlu0 %909
      %911 = vadd.xlane.f32.xlu0 %v806
      %v912 = vpop.xlane.xlu0 %911
      %v913 = vrcp.pop 128.0
      %v914 = vmul.f32 128.0, %v913
      %v915 = vsub.f32 1.0, %v914
      %v916 = vmul.f32 %v913, %v915
      %v917 = vadd.f32 %v913, %v916
      %vm918 = vweird.f32 %v913
      %v919 = vsel %vm918, %v913, %v917
      %v920 = vmul.f32 %v906, %v919
      %v921 = vmul.f32 %v908, %v919
      %v922 = vmul.f32 %v910, %v919
      %v923 = vmul.f32 %v912, %v919
      %924 = vmax.xlane.f32.xlu0 %v803
      %v925 = vpop.xlane.xlu0 %924
      %926 = vmax.xlane.f32.xlu0 %v804
      %v927 = vpop.xlane.xlu0 %926
      %928 = vmax.xlane.f32.xlu0 %v805
      %v929 = vpop.xlane.xlu0 %928
      %930 = vmax.xlane.f32.xlu0 %v806
      %v931 = vpop.xlane.xlu0 %930
      %v932 = vld [vmem:[%s5] sm:$0x3]
      %v933 = vld [vmem:[%s6] sm:$0x3]
      %v935 = vsel %vm447, %v932, 0
      %937 = vmatpush.msra.mxu0 0.0
      %938 = vmatpush.msra.mxu0 0.0
      %939 = vmatpush.msra.mxu0 0.0
      %940 = vmatpush.msra.mxu0 0.0
      %941 = vmatpush.msra.mxu0 0.0
      %942 = vmatpush.msra.mxu0 0.0
      %943 = vmatpush.msra.mxu0 0.0
      %944 = vmatpush.msra.mxu0 0.0
      %945 = vmatpush.msra.mxu0 0.0
      %946 = vmatpush.msra.mxu0 0.0
      %947 = vmatpush.msra.mxu0 0.0
      %948 = vmatpush.msra.mxu0 0.0
      %949 = vmatpush.msra.mxu0 %v923
      %950 = vmatpush.msra.mxu0 %v922
      %951 = vmatpush.msra.mxu0 %v921
      %952 = vmatpush.msra.mxu0 %v920
      %953 = vmatmul.f32.gmra.mxu0 %v935
      %v954 = vpop.f32.mrf.mxu0
      %v955 = vadd.f32 %v933, %v954
      %956 = vdwg.mxu0
      %v957 = vmax.f32 %v955, 0.0
      %958 = vmatpush.msra.mxu0 0.0
      %959 = vmatpush.msra.mxu0 0.0
      %960 = vmatpush.msra.mxu0 0.0
      %961 = vmatpush.msra.mxu0 0.0
      %962 = vmatpush.msra.mxu0 0.0
      %963 = vmatpush.msra.mxu0 0.0
      %964 = vmatpush.msra.mxu0 0.0
      %965 = vmatpush.msra.mxu0 0.0
      %966 = vmatpush.msra.mxu0 0.0
      %967 = vmatpush.msra.mxu0 0.0
      %968 = vmatpush.msra.mxu0 0.0
      %969 = vmatpush.msra.mxu0 0.0
      %970 = vmatpush.msra.mxu0 %v931
      %971 = vmatpush.msra.mxu0 %v929
      %972 = vmatpush.msra.mxu0 %v927
      %973 = vmatpush.msra.mxu0 %v925
      %974 = vmatmul.f32.gmra.mxu0 %v935
      %v975 = vpop.f32.mrf.mxu0
      %v976 = vadd.f32 %v933, %v975
      %977 = vdwg.mxu0
      %v978 = vmax.f32 %v976, 0.0
      %v979 = vld [vmem:[%s7] sm:$0xff]
      %v980 = vld [vmem:[%s7 + $0x8] sm:$0xff]
      %v981 = vld [vmem:[%s7 + $0x10] sm:$0xff]
      %v982 = vld [vmem:[%s7 + $0x18] sm:$0xff]
      %v983 = vadd.f32 %v957, %v978
      %v984 = vmul.f32 %v738, 2.0
      %v985 = vmul.f32 %v739, 2.0
      %v986 = vmul.f32 %v740, 2.0
      %v987 = vmul.f32 %v741, 2.0
      %vm988 = vcmask 15360
      %v990 = vsel %vm988, %v979, 0
      %v993 = vsel %vm988, %v980, 0
      %v996 = vsel %vm988, %v981, 0
      %v999 = vsel %vm988, %v982, 0
      %vm1001 = vcmask 1041408
      %v1003 = vsel %vm1001, %v983, 0
      %1005 = vmatpush.msra.mxu0 0.0
      %1006 = vmatpush.msra.mxu0 0.0
      %1007 = vmatpush.msra.mxu0 0.0
      %1008 = vmatpush.msra.mxu0 0.0
      %1009 = vmatpush.msra.mxu0 0.0
      %1010 = vmatpush.msra.mxu0 0.0
      %1011 = vmatpush.msra.mxu0 0.0
      %1012 = vmatpush.msra.mxu0 0.0
      %1013 = vmatpush.msra.mxu0 0.0
      %1014 = vmatpush.msra.mxu0 0.0
      %1015 = vmatpush.msra.mxu0 0.0
      %1016 = vmatpush.msra.mxu0 0.0
      %1017 = vmatpush.msra.mxu0 0.0
      %1018 = vmatpush.msra.mxu0 0.0
      %1019 = vmatpush.msra.mxu0 0.0
      %1020 = vmatpush.msra.mxu0 %v1003
      %1021 = vmatmul.f32.gmra.mxu0 %v990
      %v1022 = vpop.f32.mrf.mxu0
      %v1023 = vadd.f32 %v984, %v1022
      %1024 = vmatmul.f32.gmra.mxu0 %v993
      %v1025 = vpop.f32.mrf.mxu0
      %v1026 = vadd.f32 %v985, %v1025
      %1027 = vmatmul.f32.gmra.mxu0 %v996
      %v1028 = vpop.f32.mrf.mxu0
      %v1029 = vadd.f32 %v986, %v1028
      %1030 = vmatmul.f32.gmra.mxu0 %v999
      %v1031 = vpop.f32.mrf.mxu0
      %v1032 = vadd.f32 %v987, %v1031
      %1033 = vdwg.mxu0
      %v1034 = vxor.u32 %v1023, 2147483648
      %v1035 = vxor.u32 %v1026, 2147483648
      %v1036 = vxor.u32 %v1029, 2147483648
      %v1037 = vxor.u32 %v1032, 2147483648
      %v1038 = vmul.f32 %v1034, 1.442695
      %v1039 = vpow.pop %v1038
      %v1040 = vmul.f32 %v1035, 1.442695
      %v1041 = vpow.pop %v1040
      %v1042 = vmul.f32 %v1036, 1.442695
      %v1043 = vpow.pop %v1042
      %v1044 = vmul.f32 %v1037, 1.442695
      %v1045 = vpow.pop %v1044
      %v1046 = vadd.f32 %v1039, 1.0
      %v1047 = vadd.f32 %v1041, 1.0
      %v1048 = vadd.f32 %v1043, 1.0
      %v1049 = vadd.f32 %v1045, 1.0
      %v1050 = vrcp.pop %v1046
      %v1051 = vmul.f32 %v1046, %v1050
      %v1052 = vsub.f32 1.0, %v1051
      %v1053 = vmul.f32 %v1050, %v1052
      %v1054 = vadd.f32 %v1050, %v1053
      %vm1055 = vweird.f32 %v1046
      %vm1056 = vweird.f32 %v1050
      %vm1057 = vmor %vm1055, %vm1056
      %v1058 = vsel %vm1057, %v1050, %v1054
      %v1059 = vand.u32 2147483647, %v1046
      %vm1060 = vcmp.eq.f32.partialorder %v1059, 8.507059e+37
      %v1061 = vand.u32 %v1046, 2147483648
      %v1062 = vor.u32 1.1754944e-38, %v1061
      %v1063 = vsel %vm1060, %v1062, %v1058
      %v1064 = vmul.f32 1.0, %v1063
      %v1065 = vrcp.pop %v1047
      %v1066 = vmul.f32 %v1047, %v1065
      %v1067 = vsub.f32 1.0, %v1066
      %v1068 = vmul.f32 %v1065, %v1067
      %v1069 = vadd.f32 %v1065, %v1068
      %vm1070 = vweird.f32 %v1047
      %vm1071 = vweird.f32 %v1065
      %vm1072 = vmor %vm1070, %vm1071
      %v1073 = vsel %vm1072, %v1065, %v1069
      %v1074 = vand.u32 2147483647, %v1047
      %vm1075 = vcmp.eq.f32.partialorder %v1074, 8.507059e+37
      %v1076 = vand.u32 %v1047, 2147483648
      %v1077 = vor.u32 1.1754944e-38, %v1076
      %v1078 = vsel %vm1075, %v1077, %v1073
      %v1079 = vmul.f32 1.0, %v1078
      %v1080 = vrcp.pop %v1048
      %v1081 = vmul.f32 %v1048, %v1080
      %v1082 = vsub.f32 1.0, %v1081
      %v1083 = vmul.f32 %v1080, %v1082
      %v1084 = vadd.f32 %v1080, %v1083
      %vm1085 = vweird.f32 %v1048
      %vm1086 = vweird.f32 %v1080
      %vm1087 = vmor %vm1085, %vm1086
      %v1088 = vsel %vm1087, %v1080, %v1084
      %v1089 = vand.u32 2147483647, %v1048
      %vm1090 = vcmp.eq.f32.partialorder %v1089, 8.507059e+37
      %v1091 = vand.u32 %v1048, 2147483648
      %v1092 = vor.u32 1.1754944e-38, %v1091
      %v1093 = vsel %vm1090, %v1092, %v1088
      %v1094 = vmul.f32 1.0, %v1093
      %v1095 = vrcp.pop %v1049
      %v1096 = vmul.f32 %v1049, %v1095
      %v1097 = vsub.f32 1.0, %v1096
      %v1098 = vmul.f32 %v1095, %v1097
      %v1099 = vadd.f32 %v1095, %v1098
      %vm1100 = vweird.f32 %v1049
      %vm1101 = vweird.f32 %v1095
      %vm1102 = vmor %vm1100, %vm1101
      %v1103 = vsel %vm1102, %v1095, %v1099
      %v1104 = vand.u32 2147483647, %v1049
      %vm1105 = vcmp.eq.f32.partialorder %v1104, 8.507059e+37
      %v1106 = vand.u32 %v1049, 2147483648
      %v1107 = vor.u32 1.1754944e-38, %v1106
      %v1108 = vsel %vm1105, %v1107, %v1103
      %v1109 = vmul.f32 1.0, %v1108
      %1111 = vset.pattern.permute.xlu0 0
      %1112 = vperm.xlu0 %1111, %v1064
      %v1113 = vpop.permute.xlu0 %1112
      %1116 = vset.pattern.permute.xlu0 0
      %1117 = vperm.xlu0 %1116, %v1079
      %v1118 = vpop.permute.xlu0 %1117
      %1121 = vset.pattern.permute.xlu0 0
      %1122 = vperm.xlu0 %1121, %v1094
      %v1123 = vpop.permute.xlu0 %1122
      %1126 = vset.pattern.permute.xlu0 0
      %1127 = vperm.xlu0 %1126, %v1109
      %v1128 = vpop.permute.xlu0 %1127
      %v1130 = vmul.f32 %v803, %v1113
      %v1131 = vmul.f32 %v804, %v1118
      %v1132 = vmul.f32 %v805, %v1123
      %v1133 = vmul.f32 %v806, %v1128
      %1134 = vst [vmem:[%s387] sm:$0xff] %v1130
      %1135 = vst [vmem:[%s387 + $0x8] sm:$0xff] %v1131
      %1136 = vst [vmem:[%s387 + $0x10] sm:$0xff] %v1132
      %1137 = vst [vmem:[%s387 + $0x18] sm:$0xff] %v1133
      %1138 = vst [vmem:[%s392] sm:$0xff] %v897
      %1139 = vst [vmem:[%s392 + $0x8] sm:$0xff] %v898
      %1140 = vst [vmem:[%s392 + $0x10] sm:$0xff] %v899
      %1141 = vst [vmem:[%s392 + $0x18] sm:$0xff] %v900
      %1142 = vst [vmem:[%s392 + $0x20] sm:$0xff] %v901
      %1143 = vst [vmem:[%s392 + $0x28] sm:$0xff] %v902
      %1144 = vst [vmem:[%s392 + $0x30] sm:$0xff] %v903
      %1145 = vst [vmem:[%s392 + $0x38] sm:$0xff] %v904
      %p1146 = scmp.lt.s32.totalorder %s22, 1
      %s1147 = scalar_select %p1146, %s22, 1
      %s1148 = smul.addr %s1147, 4
      %s1149 = smul.addr %s1148, 8
      %s1150 = scalar_lea.vmem %s9, %s1149
      %p1151 = scmp.lt.s32.totalorder %s22, 1
      %s1152 = scalar_select %p1151, %s22, 1
      %s1153 = smul.addr %s1152, 8
      %s1154 = smul.addr %s1153, 8
      %s1155 = scalar_lea.vmem %s10, %s1154
      // Predicated region
      $region57: #{match_block_pallas.1} parent=55 // pred_check
        %p1156 = pneg %p239
      $region58: #{match_block_pallas.1} parent=55 // pred_check_branch
        %1158 = sbr.rel (%p1156) target = $region60
      $region59: #{match_block_pallas.1} parent=55 // pred_region
        _
      $region60: #{match_block_pallas.1} parent=55 // pred_fallthru
        _
      // Predicated region
      $region61: #{match_block_pallas.1} parent=55 // pred_check
        %p1159 = pneg %p265
      $region62: #{match_block_pallas.1} parent=55 // pred_check_branch
        %1161 = sbr.rel (%p1159) target = $region64
      $region63: #{match_block_pallas.1} parent=55 // pred_region
        _
      $region64: #{match_block_pallas.1} parent=55 // pred_fallthru
        _
    $region56: #{match_block_pallas.1} parent=5 // pred_fallthru
      _
    %p1162 = scmp.le.s32.totalorder 2, %s17
    // Predicated region
    $region65: #{match_block_pallas.1} parent=5 // pred_check
      %p1163 = pneg %p1162
    $region66: #{match_block_pallas.1} parent=5 // pred_check_branch
      %1165 = sbr.rel (%p1163) target = $region68
    $region67: #{match_block_pallas.1} parent=5 // pred_region
      %s1166 = ssub.s32 %s17, 2
      // Predicated region
      $region69: #{match_block_pallas.1} parent=67 // pred_check
        %p1167 = pneg %p245
      $region70: #{match_block_pallas.1} parent=67 // pred_check_branch
        %1169 = sbr.rel (%p1167) target = $region72
      $region71: #{match_block_pallas.1} parent=67 // pred_region
        %p1170 = scmp.lt.s32.totalorder %s23, 1
        %s1171 = scalar_select %p1170, %s23, 1
        %s1172 = smul.addr %s1171, 4
        %s1173 = smul.addr %s1172, 8
        %s1174 = scalar_lea.vmem %s9, %s1173
      $region72: #{match_block_pallas.1} parent=67 // pred_fallthru
        _
      // Predicated region
      $region73: #{match_block_pallas.1} parent=67 // pred_check
        %p1175 = pneg %p271
      $region74: #{match_block_pallas.1} parent=67 // pred_check_branch
        %1177 = sbr.rel (%p1175) target = $region76
      $region75: #{match_block_pallas.1} parent=67 // pred_region
        %p1178 = scmp.lt.s32.totalorder %s23, 1
        %s1179 = scalar_select %p1178, %s23, 1
        %s1180 = smul.addr %s1179, 8
        %s1181 = smul.addr %s1180, 8
        %s1182 = scalar_lea.vmem %s10, %s1181
      $region76: #{match_block_pallas.1} parent=67 // pred_fallthru
        _
    $region68: #{match_block_pallas.1} parent=5 // pred_fallthru
      _
  $region6: #{match_block_pallas.1} parent=0 // loop_footer
    %s21 = sadd.s32 1, %s17
  $region7: #{match_block_pallas.1} parent=0 // loop_footer_branch
    %16 = sbr.rel target = $region3
  $region8: #{match_block_pallas.1} parent=0 // loop_exit
    _

</llo_original>
